<compile_context>
chip_gen: v6e
topology: v6e:2x2x1
jax: 0.10.0
libtpu: 0.0.40
codegen_flags: <defaults>
</compile_context>

<pallas_src>
import jax
import jax.numpy as jnp
from jax.experimental import pallas as pl
from jax.experimental.pallas import tpu as pltpu

NUM_TOKENS = 8          # demo value; the torch module default is 100
STRATEGY = "random"
_DMA_POOL = 8           # max in-flight row DMAs in the pooled gather path


# ----------------------------------------------------------------------------
# Index selection (glue, mirrors torch.randperm(...)[:T].sort() semantics).
# ----------------------------------------------------------------------------
def _sample_indices(key, seq_len, num_tokens, strategy, keep_cls):
    """Pick the token indices to keep. Random subset via top-k over random keys."""
    if strategy != "random":
        return jnp.arange(num_tokens, dtype=jnp.int32)
    if keep_cls and seq_len > 1:
        # Uniform random (T-1)-subset of [1, seq_len): top-k of S-1 random keys
        # (avoids the O(S log S) full permutation + sort).
        scores = jax.random.uniform(key, (seq_len - 1,), dtype=jnp.float32)
        _, sel = jax.lax.top_k(scores, num_tokens - 1)
        rest = jnp.sort(sel).astype(jnp.int32) + 1
        return jnp.concatenate([jnp.zeros((1,), jnp.int32), rest])
    scores = jax.random.uniform(key, (seq_len,), dtype=jnp.float32)
    _, sel = jax.lax.top_k(scores, num_tokens)
    return jnp.sort(sel).astype(jnp.int32)


# ----------------------------------------------------------------------------
# Fast path: whole (B,S,H) block in VMEM, rows selected with dynamic slices.
# ----------------------------------------------------------------------------
def _vmem_gather_kernel(idx_ref, tok_ref, out_ref):
    """out_ref[:, t, :] = tok_ref[:, idx_ref[t], :]  (everything VMEM-resident)."""
    num_rows = out_ref.shape[1]              # static (= num_tokens)
    for t in range(num_rows):                # static unroll; T is small
        out_ref[:, pl.ds(t, 1), :] = tok_ref[:, pl.ds(idx_ref[t], 1), :]


def _gather_rows_vmem(tokens_bsh, indices, *, vmem_limit_bytes):
    B, S, H = tokens_bsh.shape
    T = int(indices.shape[0])
    return pl.pallas_call(
        _vmem_gather_kernel,
        out_shape=jax.ShapeDtypeStruct((B, T, H), tokens_bsh.dtype),
        grid_spec=pltpu.PrefetchScalarGridSpec(
            num_scalar_prefetch=1,                    # indices -> SMEM up front
            grid=(1,),
            in_specs=[pl.BlockSpec((B, S, H), lambda i, idx: (0, 0, 0))],
            out_specs=pl.BlockSpec((B, T, H), lambda i, idx: (0, 0, 0)),
        ),
        compiler_params=pltpu.CompilerParams(
            dimension_semantics=("arbitrary",),
            vmem_limit_bytes=int(vmem_limit_bytes),
        ),
    )(indices, tokens_bsh)


# ----------------------------------------------------------------------------
# Large path: pure HBM->HBM row-gather DMAs (no VMEM staging, no vreg traffic).
# ----------------------------------------------------------------------------
def _dma_gather_kernel(idx_ref, tok_hbm, out_hbm, sems):
    """Gather tok_hbm[:, idx_ref[t], :] -> out_hbm[:, t, :] for all t.

    T <= _DMA_POOL: fully unrolled, all copies in flight before any wait.
    T >  _DMA_POOL: bounded pool of in-flight copies (constant semaphore /
                    code footprint), starts overlapped with completions.
    """
    num_rows = idx_ref.shape[0]              # static (= num_tokens)

    def row_copy(src_row, dst_row, slot):
        return pltpu.make_async_copy(
            tok_hbm.at[:, pl.ds(src_row, 1), :],   # (B, 1, H) strided HBM slice
            out_hbm.at[:, pl.ds(dst_row, 1), :],
            sems.at[slot])

    if num_rows <= _DMA_POOL:
        copies = [row_copy(idx_ref[t], t, t) for t in range(num_rows)]
        for cp in copies:                     # issue everything first...
            cp.start()
        for cp in copies:                     # ...then wait
            cp.wait()
    else:
        @pl.loop(0, num_rows)
        def _(t):
            slot = t & (_DMA_POOL - 1)
            @pl.when(t >= _DMA_POOL)
            def _():
                # Free this slot: wait for the copy issued _DMA_POOL steps ago
                # (same-shape descriptor, only used for semaphore accounting).
                row_copy(0, 0, slot).wait()
            row_copy(idx_ref[t], t, slot).start()

        @pl.loop(0, _DMA_POOL)                # drain the last in-flight copies
        def _(s):
            row_copy(0, 0, s).wait()


def _gather_rows_dma(tokens_bsh, indices):
    B, S, H = tokens_bsh.shape
    T = int(indices.shape[0])
    n_sems = min(T, _DMA_POOL)
    return pl.pallas_call(
        _dma_gather_kernel,
        out_shape=jax.ShapeDtypeStruct((B, T, H), tokens_bsh.dtype),
        grid_spec=pltpu.PrefetchScalarGridSpec(
            num_scalar_prefetch=1,                       # indices -> SMEM
            grid=(1,),                                   # single step; DMAs concurrent
            in_specs=[pl.BlockSpec(memory_space=pl.ANY)],   # raw HBM ref
            out_specs=pl.BlockSpec(memory_space=pl.ANY),    # written via DMA only
            scratch_shapes=[pltpu.SemaphoreType.DMA((n_sems,))],
        ),
        compiler_params=pltpu.CompilerParams(
            dimension_semantics=("arbitrary",),
            has_side_effects=True,   # output produced solely by in-kernel DMA
        ),
    )(indices, tokens_bsh)


# ----------------------------------------------------------------------------
# Dispatch.
# ----------------------------------------------------------------------------
def _vmem_capacity_bytes():
    try:
        info = pltpu.get_tpu_info()
        for name in ("vmem_capacity_bytes", "vmem_size_bytes", "vmem_bytes"):
            v = getattr(info, name, None)
            if v:
                return int(v)
    except Exception:
        pass
    return 64 << 20   # conservative fallback: v7x physical VMEM


def token_sampler_forward(tokens, key, num_tokens=NUM_TOKENS,
                          strategy=STRATEGY, attention_mask=None,
                          keep_cls=True, _force_path=None):
    """JAX/Pallas equivalent of TokenSampler.forward.

    tokens: [B, S, H] -> [B, num_tokens, H].
    attention_mask is accepted but unused (same as the torch module).
    _force_path in {None, "vmem", "dma"} is for testing only.
    """
    B, S, H = tokens.shape
    if S <= num_tokens:
        # Trivial zero-pad path kept in plain JAX (no hot compute).
        pad = jnp.zeros((B, num_tokens - S, H), dtype=tokens.dtype)
        return jnp.concatenate([tokens, pad], axis=1)

    if strategy != "random":
        # Contiguous slice — a single strided copy XLA already does optimally.
        return tokens[:, :num_tokens, :]

    indices = _sample_indices(key, S, num_tokens, strategy, keep_cls)

    itemsize = jnp.dtype(tokens.dtype).itemsize
    vmem_budget = _vmem_capacity_bytes() // 2            # 32 MiB on v7x, 64 MiB v5e/v6e
    # input + output blocks, double-buffered by the auto pipeline
    need = 2 * (B * S * H + B * num_tokens * H) * itemsize
    if _force_path == "vmem" or (_force_path is None and need <= vmem_budget):
        return _gather_rows_vmem(tokens, indices, vmem_limit_bytes=vmem_budget)
    return _gather_rows_dma(tokens, indices)


# ----------------------------------------------------------------------------
# Demo / self-test.
# ----------------------------------------------------------------------------
if __name__ == "__main__":
    B, S, H = 2, 16, 32            # seq_len > num_tokens -> random-sampling path
    root = jax.random.PRNGKey(0)
    k_tokens, k_sample = jax.random.split(root)
    tokens = jax.random.normal(k_tokens, (B, S, H), dtype=jnp.float32)

    # 1) default dispatch (small shape -> VMEM-resident gather)
    out = jax.block_until_ready(token_sampler_forward(tokens, k_sample, keep_cls=True))
    ref_idx = _sample_indices(k_sample, S, NUM_TOKENS, STRATEGY, True)
    ref = jnp.take(tokens, ref_idx, axis=1)
    assert out.shape == (B, NUM_TOKENS, H), out.shape
    assert jnp.allclose(out, ref), "VMEM-path gather mismatch vs. reference"
    assert jnp.allclose(out[:, 0, :], tokens[:, 0, :]), "CLS token not kept"

    # 2) forced HBM->HBM DMA path (unrolled variant, T <= pool)
    out_dma = jax.block_until_ready(
        token_sampler_forward(tokens, k_sample, keep_cls=True, _force_path="dma"))
    assert jnp.allclose(out_dma, ref), "DMA-path (unrolled) gather mismatch"

    # 3) forced DMA path with T > pool to exercise the bounded semaphore pool
    S2, T2 = 64, 24
    tokens2 = jax.random.normal(k_tokens, (B, S2, H), dtype=jnp.float32)
    out_pool = jax.block_until_ready(
        token_sampler_forward(tokens2, k_sample, num_tokens=T2, keep_cls=True,
                              _force_path="dma"))
    ref_idx2 = _sample_indices(k_sample, S2, T2, STRATEGY, True)
    ref2 = jnp.take(tokens2, ref_idx2, axis=1)
    assert out_pool.shape == (B, T2, H)
    assert jnp.allclose(out_pool, ref2), "DMA-path (pooled) gather mismatch"

    # 4) padding path (S <= num_tokens)
    short = jax.random.normal(k_tokens, (B, 5, H), dtype=jnp.float32)
    out_pad = jax.block_until_ready(token_sampler_forward(short, k_sample))
    assert out_pad.shape == (B, NUM_TOKENS, H)
    assert jnp.allclose(out_pad[:, :5, :], short)
    assert jnp.allclose(out_pad[:, 5:, :], 0.0)

    # 5) non-random strategy bypasses the kernels: contiguous slice
    out_first = jax.block_until_ready(
        token_sampler_forward(tokens, k_sample, strategy="first"))
    assert jnp.allclose(out_first, tokens[:, :NUM_TOKENS, :])

    print("KERNEL_OK")
</pallas_src>

<mosaic_0001>
module attributes {stable_mosaic.version = 11 : i64} {
  func.func @_vmem_gather_kernel(%arg0: i32, %arg1: memref<8xi32, #tpu.memory_space<smem>>, %arg2: memref<2x16x32xf32, #tpu.memory_space<vmem>>, %arg3: memref<2x8x32xf32, #tpu.memory_space<vmem>>) attributes {dimension_semantics = [#tpu.dimension_semantics<arbitrary>], iteration_bounds = array<i64: 1>, scalar_prefetch = 1 : i64, scratch_operands = 0 : i64, tpu.core_type = #tpu.core_type<tc>, window_params = [{pipeline_mode = #tpu.pipeline_mode<synchronous>, transform_indices = @transform_0, window_bounds = array<i64: 2, 16, 32>}, {pipeline_mode = #tpu.pipeline_mode<synchronous>, transform_indices = @transform_1, window_bounds = array<i64: 2, 8, 32>}]} {
    %c0 = arith.constant 0 : index
    %0 = memref.load %arg1[%c0] : memref<8xi32, #tpu.memory_space<smem>>
    %c0_0 = arith.constant 0 : index
    %1 = arith.index_cast %0 : i32 to index
    %c0_1 = arith.constant 0 : index
    %2 = vector.load %arg2[%c0_0, %1, %c0_1] : memref<2x16x32xf32, #tpu.memory_space<vmem>>, vector<2x1x32xf32>
    %c0_2 = arith.constant 0 : index
    %c0_3 = arith.constant 0 : index
    %c0_4 = arith.constant 0 : index
    %3 = vector.load %arg3[%c0_2, %c0_3, %c0_4] : memref<2x8x32xf32, #tpu.memory_space<vmem>>, vector<2x1x32xf32>
    tpu.vector_store %arg3[%c0_2, %c0_3, %c0_4], %2 {strides = array<i32>} : memref<2x8x32xf32, #tpu.memory_space<vmem>>, vector<2x1x32xf32>,
    %c1 = arith.constant 1 : index
    %4 = memref.load %arg1[%c1] : memref<8xi32, #tpu.memory_space<smem>>
    %c0_5 = arith.constant 0 : index
    %5 = arith.index_cast %4 : i32 to index
    %c0_6 = arith.constant 0 : index
    %6 = vector.load %arg2[%c0_5, %5, %c0_6] : memref<2x16x32xf32, #tpu.memory_space<vmem>>, vector<2x1x32xf32>
    %c0_7 = arith.constant 0 : index
    %c1_8 = arith.constant 1 : index
    %c0_9 = arith.constant 0 : index
    %7 = vector.load %arg3[%c0_7, %c1_8, %c0_9] : memref<2x8x32xf32, #tpu.memory_space<vmem>>, vector<2x1x32xf32>
    tpu.vector_store %arg3[%c0_7, %c1_8, %c0_9], %6 {strides = array<i32>} : memref<2x8x32xf32, #tpu.memory_space<vmem>>, vector<2x1x32xf32>,
    %c2 = arith.constant 2 : index
    %8 = memref.load %arg1[%c2] : memref<8xi32, #tpu.memory_space<smem>>
    %c0_10 = arith.constant 0 : index
    %9 = arith.index_cast %8 : i32 to index
    %c0_11 = arith.constant 0 : index
    %10 = vector.load %arg2[%c0_10, %9, %c0_11] : memref<2x16x32xf32, #tpu.memory_space<vmem>>, vector<2x1x32xf32>
    %c0_12 = arith.constant 0 : index
    %c2_13 = arith.constant 2 : index
    %c0_14 = arith.constant 0 : index
    %11 = vector.load %arg3[%c0_12, %c2_13, %c0_14] : memref<2x8x32xf32, #tpu.memory_space<vmem>>, vector<2x1x32xf32>
    tpu.vector_store %arg3[%c0_12, %c2_13, %c0_14], %10 {strides = array<i32>} : memref<2x8x32xf32, #tpu.memory_space<vmem>>, vector<2x1x32xf32>,
    %c3 = arith.constant 3 : index
    %12 = memref.load %arg1[%c3] : memref<8xi32, #tpu.memory_space<smem>>
    %c0_15 = arith.constant 0 : index
    %13 = arith.index_cast %12 : i32 to index
    %c0_16 = arith.constant 0 : index
    %14 = vector.load %arg2[%c0_15, %13, %c0_16] : memref<2x16x32xf32, #tpu.memory_space<vmem>>, vector<2x1x32xf32>
    %c0_17 = arith.constant 0 : index
    %c3_18 = arith.constant 3 : index
    %c0_19 = arith.constant 0 : index
    %15 = vector.load %arg3[%c0_17, %c3_18, %c0_19] : memref<2x8x32xf32, #tpu.memory_space<vmem>>, vector<2x1x32xf32>
    tpu.vector_store %arg3[%c0_17, %c3_18, %c0_19], %14 {strides = array<i32>} : memref<2x8x32xf32, #tpu.memory_space<vmem>>, vector<2x1x32xf32>,
    %c4 = arith.constant 4 : index
    %16 = memref.load %arg1[%c4] : memref<8xi32, #tpu.memory_space<smem>>
    %c0_20 = arith.constant 0 : index
    %17 = arith.index_cast %16 : i32 to index
    %c0_21 = arith.constant 0 : index
    %18 = vector.load %arg2[%c0_20, %17, %c0_21] : memref<2x16x32xf32, #tpu.memory_space<vmem>>, vector<2x1x32xf32>
    %c0_22 = arith.constant 0 : index
    %c4_23 = arith.constant 4 : index
    %c0_24 = arith.constant 0 : index
    %19 = vector.load %arg3[%c0_22, %c4_23, %c0_24] : memref<2x8x32xf32, #tpu.memory_space<vmem>>, vector<2x1x32xf32>
    tpu.vector_store %arg3[%c0_22, %c4_23, %c0_24], %18 {strides = array<i32>} : memref<2x8x32xf32, #tpu.memory_space<vmem>>, vector<2x1x32xf32>,
    %c5 = arith.constant 5 : index
    %20 = memref.load %arg1[%c5] : memref<8xi32, #tpu.memory_space<smem>>
    %c0_25 = arith.constant 0 : index
    %21 = arith.index_cast %20 : i32 to index
    %c0_26 = arith.constant 0 : index
    %22 = vector.load %arg2[%c0_25, %21, %c0_26] : memref<2x16x32xf32, #tpu.memory_space<vmem>>, vector<2x1x32xf32>
    %c0_27 = arith.constant 0 : index
    %c5_28 = arith.constant 5 : index
    %c0_29 = arith.constant 0 : index
    %23 = vector.load %arg3[%c0_27, %c5_28, %c0_29] : memref<2x8x32xf32, #tpu.memory_space<vmem>>, vector<2x1x32xf32>
    tpu.vector_store %arg3[%c0_27, %c5_28, %c0_29], %22 {strides = array<i32>} : memref<2x8x32xf32, #tpu.memory_space<vmem>>, vector<2x1x32xf32>,
    %c6 = arith.constant 6 : index
    %24 = memref.load %arg1[%c6] : memref<8xi32, #tpu.memory_space<smem>>
    %c0_30 = arith.constant 0 : index
    %25 = arith.index_cast %24 : i32 to index
    %c0_31 = arith.constant 0 : index
    %26 = vector.load %arg2[%c0_30, %25, %c0_31] : memref<2x16x32xf32, #tpu.memory_space<vmem>>, vector<2x1x32xf32>
    %c0_32 = arith.constant 0 : index
    %c6_33 = arith.constant 6 : index
    %c0_34 = arith.constant 0 : index
    %27 = vector.load %arg3[%c0_32, %c6_33, %c0_34] : memref<2x8x32xf32, #tpu.memory_space<vmem>>, vector<2x1x32xf32>
    tpu.vector_store %arg3[%c0_32, %c6_33, %c0_34], %26 {strides = array<i32>} : memref<2x8x32xf32, #tpu.memory_space<vmem>>, vector<2x1x32xf32>,
    %c7 = arith.constant 7 : index
    %28 = memref.load %arg1[%c7] : memref<8xi32, #tpu.memory_space<smem>>
    %c0_35 = arith.constant 0 : index
    %29 = arith.index_cast %28 : i32 to index
    %c0_36 = arith.constant 0 : index
    %30 = vector.load %arg2[%c0_35, %29, %c0_36] : memref<2x16x32xf32, #tpu.memory_space<vmem>>, vector<2x1x32xf32>
    %c0_37 = arith.constant 0 : index
    %c7_38 = arith.constant 7 : index
    %c0_39 = arith.constant 0 : index
    %31 = vector.load %arg3[%c0_37, %c7_38, %c0_39] : memref<2x8x32xf32, #tpu.memory_space<vmem>>, vector<2x1x32xf32>
    tpu.vector_store %arg3[%c0_37, %c7_38, %c0_39], %30 {strides = array<i32>} : memref<2x8x32xf32, #tpu.memory_space<vmem>>, vector<2x1x32xf32>,
    return
  }
  func.func @transform_0(%arg0: i32, %arg1: memref<8xi32, #tpu.memory_space<smem>>) -> (i32, i32, i32) {
    %c0_i32 = arith.constant 0 : i32
    %c0_i32_0 = arith.constant 0 : i32
    %c0_i32_1 = arith.constant 0 : i32
    %c0_i32_2 = arith.constant 0 : i32
    return %c0_i32, %c0_i32_0, %c0_i32_1 : i32, i32, i32
  }
  func.func @transform_1(%arg0: i32, %arg1: memref<8xi32, #tpu.memory_space<smem>>) -> (i32, i32, i32) {
    %c0_i32 = arith.constant 0 : i32
    %c0_i32_0 = arith.constant 0 : i32
    %c0_i32_1 = arith.constant 0 : i32
    %c0_i32_2 = arith.constant 0 : i32
    return %c0_i32, %c0_i32_0, %c0_i32_1 : i32, i32, i32
  }
}

</mosaic_0001>

<llo_original>
// kernel: tpu_custom_call.1
$region0: #{tpu_custom_call.1}
  #allocation0 [shape = 'u32[]', space=smem, size = 0x4, offset = 0x4, fixed_abs, tag = 'smem constant byte address 0x4 - core index']
  #allocation1 [shape = 'u32[144,128]{1,0:T(1,128)}', space=vmem, size = 0x12000, scoped, tag = 'internal scratch']
  #allocation2 [shape = 's32[1]{0}', space=sflag, size = 0x4, scoped, tag = 'scoped memory for tpu_custom_call.1']
  #allocation3 [shape = 'u8[512]{0}', space=smem, size = 0x200, scoped, tag = 'prefetched SMEM operand 0']
  %s0 = inlined_call_operand.hbm [shape: s32[8], index: 0, kind: input, shape index: {}]
  %s1 = inlined_call_operand.hbm [shape: f32[2,16,32], index: 1, kind: input, shape index: {}]
  %s2 = inlined_call_operand.hbm [shape: f32[2,8,32], index: 2, kind: output, shape index: {}]
  %s3 = sld [smem:[#allocation0]]
  $region18: #{tpu_custom_call.1} parent=0
    _
  %s5 = ssub.s32 1, %s3
  %s6 = scalar_select 0, %s5, %s3
  %8 = dma.hbm_to_smem %s0, 16, [#allocation3], [#allocation2]
  %9 = dma.done [#allocation2], 16
  %10 = sfence
  $region1: #{tpu_custom_call.1} parent=0
    #allocation4 [shape = 'u8[16384]{0}', space=vmem, size = 0x4000, scoped, tag = 'input window, operand 1, single buffered']
    #allocation5 [shape = 's32[1]{0}', space=sflag, size = 0x4, scoped, tag = 'scoped memory for tpu_custom_call.1']
    #allocation6 [shape = 's32[1]{0}', space=sflag, size = 0x4, scoped, tag = 'scoped memory for tpu_custom_call.1']
    #allocation7 [shape = 'u8[8192]{0}', space=vmem, size = 0x2000, scoped, tag = 'output window, operand 0, single buffered']
    %11 = vsyncpa [#allocation5], 0
    %12 = vsyncpa [#allocation6], 0
    // Predicated region
    $region2: #{tpu_custom_call.1} parent=1 // pred_check
      _
    $region3: #{tpu_custom_call.1} parent=1 // pred_check_branch
      %14 = sbr.rel (0) target = $region5
    $region4: #{tpu_custom_call.1} parent=1 // pred_region
      %s16 = ssub.s32 512, 512
      %17 = vsyncadd [#allocation5], %s16
      %s18 = sshll.u32 [#allocation4], 4
      %s19 = int_to_ptr.vmem [resolvable:$true] %s18
      %24 = dma.hbm_to_vmem [thread:$0]  %s1, 512, %s19, [#allocation5], 128, 128, 8
    $region5: #{tpu_custom_call.1} parent=1 // pred_fallthru
      _
    // Predicated region
    $region6: #{tpu_custom_call.1} parent=1 // pred_check
      _
    $region7: #{tpu_custom_call.1} parent=1 // pred_check_branch
      %26 = sbr.rel (0) target = $region9
    $region8: #{tpu_custom_call.1} parent=1 // pred_region
      %27 = dma.done [#allocation5], 512
    $region9: #{tpu_custom_call.1} parent=1 // pred_fallthru
      _
    %s28 = sld [smem:[#allocation3]]
    %s29 = scalar_lea.vmem [#allocation4], %s28
    %v30 = vld [vmem:[%s29] sm:$0x1]
    %v31 = vld [vmem:[%s29 + $0x10] sm:$0x1]
    %vm32 = vcmask 253952
    %33 = vst.msk [vmem:[#allocation7] sm:$0x1] %vm32, %v30
    %34 = vst.msk [vmem:[#allocation7 + $0x8] sm:$0x1] %vm32, %v31
    %s35 = sld [smem:[#allocation3 + $0x1]]
    %s36 = scalar_lea.vmem [#allocation4], %s35
    %v37 = vld [vmem:[%s36] sm:$0x1]
    %v38 = vld [vmem:[%s36 + $0x10] sm:$0x1]
    %39 = vst.msk [vmem:[#allocation7 + $0x1] sm:$0x1] %vm32, %v37
    %40 = vst.msk [vmem:[#allocation7 + $0x9] sm:$0x1] %vm32, %v38
    %s41 = sld [smem:[#allocation3 + $0x2]]
    %s42 = scalar_lea.vmem [#allocation4], %s41
    %v43 = vld [vmem:[%s42] sm:$0x1]
    %v44 = vld [vmem:[%s42 + $0x10] sm:$0x1]
    %45 = vst.msk [vmem:[#allocation7 + $0x2] sm:$0x1] %vm32, %v43
    %46 = vst.msk [vmem:[#allocation7 + $0xa] sm:$0x1] %vm32, %v44
    %s47 = sld [smem:[#allocation3 + $0x3]]
    %s48 = scalar_lea.vmem [#allocation4], %s47
    %v49 = vld [vmem:[%s48] sm:$0x1]
    %v50 = vld [vmem:[%s48 + $0x10] sm:$0x1]
    %51 = vst.msk [vmem:[#allocation7 + $0x3] sm:$0x1] %vm32, %v49
    %52 = vst.msk [vmem:[#allocation7 + $0xb] sm:$0x1] %vm32, %v50
    %s53 = sld [smem:[#allocation3 + $0x4]]
    %s54 = scalar_lea.vmem [#allocation4], %s53
    %v55 = vld [vmem:[%s54] sm:$0x1]
    %v56 = vld [vmem:[%s54 + $0x10] sm:$0x1]
    %57 = vst.msk [vmem:[#allocation7 + $0x4] sm:$0x1] %vm32, %v55
    %58 = vst.msk [vmem:[#allocation7 + $0xc] sm:$0x1] %vm32, %v56
    %s59 = sld [smem:[#allocation3 + $0x5]]
    %s60 = scalar_lea.vmem [#allocation4], %s59
    %v61 = vld [vmem:[%s60] sm:$0x1]
    %v62 = vld [vmem:[%s60 + $0x10] sm:$0x1]
    %63 = vst.msk [vmem:[#allocation7 + $0x5] sm:$0x1] %vm32, %v61
    %64 = vst.msk [vmem:[#allocation7 + $0xd] sm:$0x1] %vm32, %v62
    %s65 = sld [smem:[#allocation3 + $0x6]]
    %s66 = scalar_lea.vmem [#allocation4], %s65
    %v67 = vld [vmem:[%s66] sm:$0x1]
    %v68 = vld [vmem:[%s66 + $0x10] sm:$0x1]
    %69 = vst.msk [vmem:[#allocation7 + $0x6] sm:$0x1] %vm32, %v67
    %70 = vst.msk [vmem:[#allocation7 + $0xe] sm:$0x1] %vm32, %v68
    %s71 = sld [smem:[#allocation3 + $0x7]]
    %s72 = scalar_lea.vmem [#allocation4], %s71
    %v73 = vld [vmem:[%s72] sm:$0x1]
    %v74 = vld [vmem:[%s72 + $0x10] sm:$0x1]
    %75 = vst.msk [vmem:[#allocation7 + $0x7] sm:$0x1] %vm32, %v73
    %76 = vst.msk [vmem:[#allocation7 + $0xf] sm:$0x1] %vm32, %v74
    // Predicated region
    $region10: #{tpu_custom_call.1} parent=1 // pred_check
      _
    $region11: #{tpu_custom_call.1} parent=1 // pred_check_branch
      %78 = sbr.rel (0) target = $region13
    $region12: #{tpu_custom_call.1} parent=1 // pred_region
      %s80 = ssub.s32 256, 256
      %81 = vsyncadd [#allocation6], %s80
      %s82 = sshll.u32 [#allocation7], 4
      %s83 = int_to_ptr.vmem [resolvable:$true] %s82
      %88 = dma.vmem_to_hbm [thread:$0]  %s83, 256, %s2, [#allocation6], 128, 128, 8
    $region13: #{tpu_custom_call.1} parent=1 // pred_fallthru
      _
    // Predicated region
    $region14: #{tpu_custom_call.1} parent=1 // pred_check
      _
    $region15: #{tpu_custom_call.1} parent=1 // pred_check_branch
      %90 = sbr.rel (0) target = $region17
    $region16: #{tpu_custom_call.1} parent=1 // pred_region
      %91 = dma.done [#allocation6], 256
    $region17: #{tpu_custom_call.1} parent=1 // pred_fallthru
      _
    %92 = vsyncpa [#allocation5], 1
    %93 = vsyncpa [#allocation6], 1

</llo_original>
